<compile_context>
chip_gen: v5e
topology: v5e:2x2
jax: 0.10.0
libtpu: 0.0.40
codegen_flags: <defaults>
</compile_context>

<pallas_src>
import jax
import jax.numpy as jnp
from jax.experimental import pallas as pl
from jax.experimental.pallas import tpu as pltpu

LOG_STD_MAX = 2.0
LOG_STD_MIN = -20.0


def _make_policy_kernel(n_obs):
    """Kernel ref layout: [obs_0..obs_{n-1}, w1_0..w1_{n-1}, b1, wh, bh, noise, out]."""

    def kernel(*refs):
        obs_refs = refs[:n_obs]
        w1_refs = refs[n_obs:2 * n_obs]
        b1_ref, wh_ref, bh_ref, noise_ref, out_ref = refs[2 * n_obs:]

        A = noise_ref.shape[-1]

        # Hidden layer: concat folded into the matmul as a sum of partial dots
        # over row-slices of W1 (K axis split per observation tensor).
        h = jnp.dot(obs_refs[0][...], w1_refs[0][...],
                    preferred_element_type=jnp.float32)
        for o_ref, w_ref in zip(obs_refs[1:], w1_refs[1:]):
            h = h + jnp.dot(o_ref[...], w_ref[...],
                            preferred_element_type=jnp.float32)
        h = jnp.maximum(h + b1_ref[...], 0.0)

        # Fused heads: one MXU pass producing [mean | log_std] along lanes.
        hm = jnp.dot(h.astype(wh_ref.dtype), wh_ref[...],
                     preferred_element_type=jnp.float32) + bh_ref[...]
        mean = hm[:, :A]
        log_std = jnp.clip(hm[:, A:], LOG_STD_MIN, LOG_STD_MAX)  # torch.clamp
        std = jnp.exp(log_std)                                    # .exp()

        cont = jnp.tanh(mean + std * noise_ref[...])
        det = jnp.tanh(mean)
        # Single lane-dense store: [cont | det] packed along lanes.
        out_ref[...] = jnp.concatenate([cont, det], axis=1)

    return kernel


def _round_up(x, m):
    return ((x + m - 1) // m) * m


def onnxable_policy_forward(obs_list, params, noise, action_dim,
                            memory_size_value=0, batch_tile=512):
    """Replicates OnnxablePolicy.forward semantics (non-LSTM MLP policy).

    obs_list: list of 5 arrays, each (B, d_i) float32 (or (d_i,) -> batch added)
    params:   (w1, b1, wm, bm, ws, bs) with w1: (sum(d_i), H), heads (H, A)
    noise:    (B, A) standard-normal noise
    Returns (version_number, memory_size, continuous_actions,
             continuous_action_output_shape, deterministic_continuous_actions).
    """
    # has_batch_dim handling (unsqueeze if rank-1)
    obs_list = [o if o.ndim > 1 else o[None, :] for o in obs_list]
    B = obs_list[0].shape[0]
    obs_dims = [int(o.shape[1]) for o in obs_list]
    n_obs = len(obs_list)

    w1, b1, wm, bm, ws, bs = params
    H = w1.shape[1]
    A = wm.shape[1]
    assert A == action_dim
    assert sum(obs_dims) == w1.shape[0]

    # --- weight preprocessing (host, cheap, once per call) ---
    # Split W1 along K to match obs pieces -> no (B, OBS) concat in HBM.
    offs, off = [], 0
    for d in obs_dims:
        offs.append(off)
        off += d
    w1_chunks = [w1[o:o + d, :].astype(jnp.bfloat16)
                 for o, d in zip(offs, obs_dims)]
    # Fuse the two heads into one (H, 2A) weight / (1, 2A) bias.
    wh = jnp.concatenate([wm, ws], axis=1).astype(jnp.bfloat16)
    bh = jnp.concatenate([bm, bs], axis=1).astype(jnp.float32)
    b1f = b1.astype(jnp.float32)

    # --- batch padding (sublane multiple; tile multiple if gridded) ---
    if B <= batch_tile:
        B_pad = max(8, _round_up(B, 8))
        grid_tile = None
    else:
        B_pad = _round_up(B, batch_tile)
        grid_tile = batch_tile

    def pad_b(x):
        if x.shape[0] == B_pad:
            return x
        return jnp.pad(x, ((0, B_pad - x.shape[0]), (0, 0)))

    obs_pad = [pad_b(o.astype(jnp.bfloat16)) for o in obs_list]
    noise_pad = pad_b(noise.astype(jnp.float32))

    kernel = _make_policy_kernel(n_obs)
    out_shape = jax.ShapeDtypeStruct((B_pad, 2 * A), jnp.float32)
    args = (*obs_pad, *w1_chunks, b1f, wh, bh, noise_pad)

    if grid_tile is None:
        # Single invocation: no grid, no per-step pipeline scaffolding.
        out = pl.pallas_call(kernel, out_shape=out_shape)(*args)
    else:
        # Large-batch path: tile over batch, keep weights VMEM-resident,
        # shard batch tiles across TensorCores ("parallel" helps on v7x).
        TB = grid_tile

        def batch_spec(d):
            return pl.BlockSpec((TB, d), lambda i: (i, 0))

        def resident(shape):
            return pl.BlockSpec(shape, lambda i: (0, 0))

        in_specs = ([batch_spec(d) for d in obs_dims]
                    + [resident((d, H)) for d in obs_dims]
                    + [resident((1, H)),
                       resident((H, 2 * A)),
                       resident((1, 2 * A)),
                       batch_spec(A)])
        out = pl.pallas_call(
            kernel,
            grid=(B_pad // TB,),
            in_specs=in_specs,
            out_specs=pl.BlockSpec((TB, 2 * A), lambda i: (i, 0)),
            out_shape=out_shape,
            compiler_params=pltpu.CompilerParams(
                dimension_semantics=("parallel",)),
        )(*args)

    continuous_actions = out[:B, :A]
    deterministic_continuous_actions = out[:B, A:]

    # Registered buffers (constants) — plain JAX glue.
    version_number = jnp.array([3.0], dtype=jnp.float32)
    memory_size = jnp.array([float(memory_size_value)], dtype=jnp.float32)
    continuous_action_output_shape = jnp.array([float(action_dim)],
                                               dtype=jnp.float32)

    return (version_number, memory_size, continuous_actions,
            continuous_action_output_shape, deterministic_continuous_actions)


def init_params(key, obs_dim, hidden, action_dim):
    """Deterministic synthetic policy weights (2-layer MLP with two heads)."""
    k1, k2, k3 = jax.random.split(key, 3)
    scale1 = 1.0 / jnp.sqrt(obs_dim)
    scale2 = 1.0 / jnp.sqrt(hidden)
    w1 = jax.random.uniform(k1, (obs_dim, hidden), jnp.float32, -scale1, scale1)
    b1 = jnp.zeros((1, hidden), jnp.float32)
    wm = jax.random.uniform(k2, (hidden, action_dim), jnp.float32, -scale2, scale2)
    bm = jnp.zeros((1, action_dim), jnp.float32)
    ws = jax.random.uniform(k3, (hidden, action_dim), jnp.float32, -scale2, scale2)
    bs = jnp.zeros((1, action_dim), jnp.float32)
    return (w1, b1, wm, bm, ws, bs)


if __name__ == "__main__":
    key = jax.random.PRNGKey(0)

    batch = 2
    action_dim = 2
    hidden = 32
    # 5 observation tensors, each with 8 features -> combined obs dim 40
    obs_dims = [8, 8, 8, 8, 8]

    keys = jax.random.split(key, 8)
    obs_list = [
        jax.random.normal(keys[i], (batch, d), jnp.float32)
        for i, d in enumerate(obs_dims)
    ]

    params = init_params(keys[5], sum(obs_dims), hidden, action_dim)

    # TODO(synk): torch.manual_seed(42) + torch.randn_like cannot be bit-matched
    # in JAX; we use a deterministic jax.random normal draw instead.
    noise = jax.random.normal(keys[6], (batch, action_dim), jnp.float32)

    outputs = onnxable_policy_forward(obs_list, params, noise, action_dim)
    outputs = jax.block_until_ready(outputs)

    (version_number, memory_size, continuous_actions,
     continuous_action_output_shape, deterministic_continuous_actions) = outputs

    assert version_number.shape == (1,)
    assert memory_size.shape == (1,)
    assert continuous_actions.shape == (batch, action_dim)
    assert continuous_action_output_shape.shape == (1,)
    assert deterministic_continuous_actions.shape == (batch, action_dim)
    assert bool(jnp.all(jnp.abs(continuous_actions) <= 1.0))
    assert bool(jnp.all(jnp.abs(deterministic_continuous_actions) <= 1.0))
    assert bool(jnp.all(jnp.isfinite(continuous_actions)))
    assert bool(jnp.all(jnp.isfinite(deterministic_continuous_actions)))

    print("KERNEL_OK")
</pallas_src>

<mosaic_0001>
module attributes {stable_mosaic.version = 11 : i64} {
  func.func @kernel(%arg0: memref<8x8xbf16, #tpu.memory_space<vmem>>, %arg1: memref<8x8xbf16, #tpu.memory_space<vmem>>, %arg2: memref<8x8xbf16, #tpu.memory_space<vmem>>, %arg3: memref<8x8xbf16, #tpu.memory_space<vmem>>, %arg4: memref<8x8xbf16, #tpu.memory_space<vmem>>, %arg5: memref<8x32xbf16, #tpu.memory_space<vmem>>, %arg6: memref<8x32xbf16, #tpu.memory_space<vmem>>, %arg7: memref<8x32xbf16, #tpu.memory_space<vmem>>, %arg8: memref<8x32xbf16, #tpu.memory_space<vmem>>, %arg9: memref<8x32xbf16, #tpu.memory_space<vmem>>, %arg10: memref<1x32xf32, #tpu.memory_space<vmem>>, %arg11: memref<32x4xbf16, #tpu.memory_space<vmem>>, %arg12: memref<1x4xf32, #tpu.memory_space<vmem>>, %arg13: memref<8x2xf32, #tpu.memory_space<vmem>>, %arg14: memref<8x4xf32, #tpu.memory_space<vmem>>) attributes {dimension_semantics = [], scalar_prefetch = 0 : i64, scratch_operands = 0 : i64, tpu.core_type = #tpu.core_type<tc>} {
    %c0 = arith.constant 0 : index
    %c0_0 = arith.constant 0 : index
    %0 = vector.load %arg0[%c0, %c0_0] : memref<8x8xbf16, #tpu.memory_space<vmem>>, vector<8x8xbf16>
    %c0_1 = arith.constant 0 : index
    %c0_2 = arith.constant 0 : index
    %1 = vector.load %arg5[%c0_1, %c0_2] : memref<8x32xbf16, #tpu.memory_space<vmem>>, vector<8x32xbf16>
    %cst = arith.constant dense<0.000000e+00> : vector<8x32xf32>
    %2 = tpu.matmul %0, %1, %cst {dimension_numbers = #tpu.dot_dimension_numbers<[1], [0], [0], [1], [0, 0, 1, 1], [], []>} : vector<8x8xbf16>, vector<8x32xbf16>, vector<8x32xf32> -> vector<8x32xf32>
    %c0_3 = arith.constant 0 : index
    %c0_4 = arith.constant 0 : index
    %3 = vector.load %arg1[%c0_3, %c0_4] : memref<8x8xbf16, #tpu.memory_space<vmem>>, vector<8x8xbf16>
    %c0_5 = arith.constant 0 : index
    %c0_6 = arith.constant 0 : index
    %4 = vector.load %arg6[%c0_5, %c0_6] : memref<8x32xbf16, #tpu.memory_space<vmem>>, vector<8x32xbf16>
    %cst_7 = arith.constant dense<0.000000e+00> : vector<8x32xf32>
    %5 = tpu.matmul %3, %4, %cst_7 {dimension_numbers = #tpu.dot_dimension_numbers<[1], [0], [0], [1], [0, 0, 1, 1], [], []>} : vector<8x8xbf16>, vector<8x32xbf16>, vector<8x32xf32> -> vector<8x32xf32>
    %6 = arith.addf %2, %5 : vector<8x32xf32>
    %c0_8 = arith.constant 0 : index
    %c0_9 = arith.constant 0 : index
    %7 = vector.load %arg2[%c0_8, %c0_9] : memref<8x8xbf16, #tpu.memory_space<vmem>>, vector<8x8xbf16>
    %c0_10 = arith.constant 0 : index
    %c0_11 = arith.constant 0 : index
    %8 = vector.load %arg7[%c0_10, %c0_11] : memref<8x32xbf16, #tpu.memory_space<vmem>>, vector<8x32xbf16>
    %cst_12 = arith.constant dense<0.000000e+00> : vector<8x32xf32>
    %9 = tpu.matmul %7, %8, %cst_12 {dimension_numbers = #tpu.dot_dimension_numbers<[1], [0], [0], [1], [0, 0, 1, 1], [], []>} : vector<8x8xbf16>, vector<8x32xbf16>, vector<8x32xf32> -> vector<8x32xf32>
    %10 = arith.addf %6, %9 : vector<8x32xf32>
    %c0_13 = arith.constant 0 : index
    %c0_14 = arith.constant 0 : index
    %11 = vector.load %arg3[%c0_13, %c0_14] : memref<8x8xbf16, #tpu.memory_space<vmem>>, vector<8x8xbf16>
    %c0_15 = arith.constant 0 : index
    %c0_16 = arith.constant 0 : index
    %12 = vector.load %arg8[%c0_15, %c0_16] : memref<8x32xbf16, #tpu.memory_space<vmem>>, vector<8x32xbf16>
    %cst_17 = arith.constant dense<0.000000e+00> : vector<8x32xf32>
    %13 = tpu.matmul %11, %12, %cst_17 {dimension_numbers = #tpu.dot_dimension_numbers<[1], [0], [0], [1], [0, 0, 1, 1], [], []>} : vector<8x8xbf16>, vector<8x32xbf16>, vector<8x32xf32> -> vector<8x32xf32>
    %14 = arith.addf %10, %13 : vector<8x32xf32>
    %c0_18 = arith.constant 0 : index
    %c0_19 = arith.constant 0 : index
    %15 = vector.load %arg4[%c0_18, %c0_19] : memref<8x8xbf16, #tpu.memory_space<vmem>>, vector<8x8xbf16>
    %c0_20 = arith.constant 0 : index
    %c0_21 = arith.constant 0 : index
    %16 = vector.load %arg9[%c0_20, %c0_21] : memref<8x32xbf16, #tpu.memory_space<vmem>>, vector<8x32xbf16>
    %cst_22 = arith.constant dense<0.000000e+00> : vector<8x32xf32>
    %17 = tpu.matmul %15, %16, %cst_22 {dimension_numbers = #tpu.dot_dimension_numbers<[1], [0], [0], [1], [0, 0, 1, 1], [], []>} : vector<8x8xbf16>, vector<8x32xbf16>, vector<8x32xf32> -> vector<8x32xf32>
    %18 = arith.addf %14, %17 : vector<8x32xf32>
    %c0_23 = arith.constant 0 : index
    %c0_24 = arith.constant 0 : index
    %19 = vector.load %arg10[%c0_23, %c0_24] : memref<1x32xf32, #tpu.memory_space<vmem>>, vector<1x32xf32>
    %20 = vector.broadcast %19 : vector<1x32xf32> to vector<8x32xf32>
    %21 = arith.addf %18, %20 : vector<8x32xf32>
    %cst_25 = arith.constant 0.000000e+00 : f32
    %22 = vector.broadcast %cst_25 : f32 to vector<8x32xf32>
    %23 = arith.maximumf %21, %22 : vector<8x32xf32>
    %24 = arith.truncf %23 : vector<8x32xf32> to vector<8x32xbf16>
    %c0_26 = arith.constant 0 : index
    %c0_27 = arith.constant 0 : index
    %25 = vector.load %arg11[%c0_26, %c0_27] : memref<32x4xbf16, #tpu.memory_space<vmem>>, vector<32x4xbf16>
    %cst_28 = arith.constant dense<0.000000e+00> : vector<8x4xf32>
    %26 = tpu.matmul %24, %25, %cst_28 {dimension_numbers = #tpu.dot_dimension_numbers<[1], [0], [0], [1], [0, 0, 1, 1], [], []>} : vector<8x32xbf16>, vector<32x4xbf16>, vector<8x4xf32> -> vector<8x4xf32>
    %c0_29 = arith.constant 0 : index
    %c0_30 = arith.constant 0 : index
    %27 = vector.load %arg12[%c0_29, %c0_30] : memref<1x4xf32, #tpu.memory_space<vmem>>, vector<1x4xf32>
    %28 = vector.broadcast %27 : vector<1x4xf32> to vector<8x4xf32>
    %29 = arith.addf %26, %28 : vector<8x4xf32>
    %30 = vector.extract_strided_slice %29 {offsets = [0, 0], sizes = [8, 2], strides = [1, 1]} : vector<8x4xf32> to vector<8x2xf32>
    %31 = vector.extract_strided_slice %29 {offsets = [0, 2], sizes = [8, 2], strides = [1, 1]} : vector<8x4xf32> to vector<8x2xf32>
    %cst_31 = arith.constant -2.000000e+01 : f32
    %cst_32 = arith.constant 2.000000e+00 : f32
    %32 = vector.broadcast %cst_31 : f32 to vector<8x2xf32>
    %33 = arith.maximumf %32, %31 : vector<8x2xf32>
    %34 = vector.broadcast %cst_32 : f32 to vector<8x2xf32>
    %35 = arith.minimumf %34, %33 : vector<8x2xf32>
    %36 = math.exp %35 : vector<8x2xf32>
    %c0_33 = arith.constant 0 : index
    %c0_34 = arith.constant 0 : index
    %37 = vector.load %arg13[%c0_33, %c0_34] : memref<8x2xf32, #tpu.memory_space<vmem>>, vector<8x2xf32>
    %38 = arith.mulf %36, %37 : vector<8x2xf32>
    %39 = arith.addf %30, %38 : vector<8x2xf32>
    %40 = math.tanh %39 : vector<8x2xf32>
    %41 = math.tanh %30 : vector<8x2xf32>
    %42 = tpu.concatenate %40, %41 in 1 : vector<8x2xf32>, vector<8x2xf32> -> vector<8x4xf32>
    %c0_35 = arith.constant 0 : index
    %c0_36 = arith.constant 0 : index
    %43 = vector.load %arg14[%c0_35, %c0_36] : memref<8x4xf32, #tpu.memory_space<vmem>>, vector<8x4xf32>
    tpu.vector_store %arg14[%c0_35, %c0_36], %42 {strides = array<i32>} : memref<8x4xf32, #tpu.memory_space<vmem>>, vector<8x4xf32>,
    return
  }
}

</mosaic_0001>

<llo_original>
// kernel: tpu_custom_call.1
$region0: #{tpu_custom_call.1}
  #allocation0 [shape = 'u32[]', space=smem, size = 0x4, offset = 0x4, fixed_abs, tag = 'smem constant byte address 0x4 - core index']
  #allocation1 [shape = 'u32[72,128]{1,0:T(1,128)}', space=vmem, size = 0x9000, scoped, tag = 'internal scratch']
  %s0 = inlined_call_operand.vmem [shape: bf16[8,8], index: 0, kind: input, shape index: {}]
  %s1 = inlined_call_operand.vmem [shape: bf16[8,8], index: 1, kind: input, shape index: {}]
  %s2 = inlined_call_operand.vmem [shape: bf16[8,8], index: 2, kind: input, shape index: {}]
  %s3 = inlined_call_operand.vmem [shape: bf16[8,8], index: 3, kind: input, shape index: {}]
  %s4 = inlined_call_operand.vmem [shape: bf16[8,8], index: 4, kind: input, shape index: {}]
  %s5 = inlined_call_operand.vmem [shape: bf16[8,32], index: 5, kind: input, shape index: {}]
  %s6 = inlined_call_operand.hbm [shape: bf16[8,32], index: 6, kind: input, shape index: {}]
  %s7 = inlined_call_operand.vmem [shape: bf16[8,32], index: 7, kind: input, shape index: {}]
  %s8 = inlined_call_operand.hbm [shape: bf16[8,32], index: 8, kind: input, shape index: {}]
  %s9 = inlined_call_operand.hbm [shape: bf16[8,32], index: 9, kind: input, shape index: {}]
  %s10 = inlined_call_operand.vmem [shape: f32[1,32], index: 10, kind: input, shape index: {}]
  %s11 = inlined_call_operand.vmem [shape: bf16[32,4], index: 11, kind: input, shape index: {}]
  %s12 = inlined_call_operand.vmem [shape: f32[1,4], index: 12, kind: input, shape index: {}]
  %s13 = inlined_call_operand.vmem [shape: f32[8,2], index: 13, kind: input, shape index: {}]
  %s14 = inlined_call_operand.vmem [shape: f32[8,4], index: 14, kind: output, shape index: {}]
  %s15 = sld [smem:[#allocation0]]
  $region78: #{tpu_custom_call.1} parent=0
    _
  %s17 = ssub.s32 1, %s15
  %s18 = scalar_select 0, %s17, %s15
  $region1: #{tpu_custom_call.1} parent=0
    #allocation2 [shape = 'u8[2048]{0}', space=vmem, size = 0x800, scoped, tag = 'input window, operand 6, single buffered']
    #allocation3 [shape = 's32[1]{0}', space=sflag, size = 0x4, scoped, tag = 'scoped memory for tpu_custom_call.1']
    #allocation4 [shape = 'u8[2048]{0}', space=vmem, size = 0x800, scoped, tag = 'input window, operand 8, single buffered']
    #allocation5 [shape = 's32[1]{0}', space=sflag, size = 0x4, scoped, tag = 'scoped memory for tpu_custom_call.1']
    #allocation6 [shape = 'u8[2048]{0}', space=vmem, size = 0x800, scoped, tag = 'input window, operand 9, single buffered']
    %19 = vsyncpa [#allocation3], 0
    %20 = vsyncpa [#allocation5], 0
    // Predicated region
    $region2: #{tpu_custom_call.1} parent=1 // pred_check
      _
    $region3: #{tpu_custom_call.1} parent=1 // pred_check_branch
      %22 = sbr.rel (0) target = $region5
    $region4: #{tpu_custom_call.1} parent=1 // pred_region
      _
    $region5: #{tpu_custom_call.1} parent=1 // pred_fallthru
      _
    // Predicated region
    $region6: #{tpu_custom_call.1} parent=1 // pred_check
      _
    $region7: #{tpu_custom_call.1} parent=1 // pred_check_branch
      %24 = sbr.rel (0) target = $region9
    $region8: #{tpu_custom_call.1} parent=1 // pred_region
      _
    $region9: #{tpu_custom_call.1} parent=1 // pred_fallthru
      _
    // Predicated region
    $region10: #{tpu_custom_call.1} parent=1 // pred_check
      _
    $region11: #{tpu_custom_call.1} parent=1 // pred_check_branch
      %26 = sbr.rel (0) target = $region13
    $region12: #{tpu_custom_call.1} parent=1 // pred_region
      _
    $region13: #{tpu_custom_call.1} parent=1 // pred_fallthru
      _
    // Predicated region
    $region14: #{tpu_custom_call.1} parent=1 // pred_check
      _
    $region15: #{tpu_custom_call.1} parent=1 // pred_check_branch
      %28 = sbr.rel (0) target = $region17
    $region16: #{tpu_custom_call.1} parent=1 // pred_region
      _
    $region17: #{tpu_custom_call.1} parent=1 // pred_fallthru
      _
    // Predicated region
    $region18: #{tpu_custom_call.1} parent=1 // pred_check
      _
    $region19: #{tpu_custom_call.1} parent=1 // pred_check_branch
      %30 = sbr.rel (0) target = $region21
    $region20: #{tpu_custom_call.1} parent=1 // pred_region
      _
    $region21: #{tpu_custom_call.1} parent=1 // pred_fallthru
      _
    // Predicated region
    $region22: #{tpu_custom_call.1} parent=1 // pred_check
      _
    $region23: #{tpu_custom_call.1} parent=1 // pred_check_branch
      %32 = sbr.rel (0) target = $region25
    $region24: #{tpu_custom_call.1} parent=1 // pred_region
      _
    $region25: #{tpu_custom_call.1} parent=1 // pred_fallthru
      _
    // Predicated region
    $region26: #{tpu_custom_call.1} parent=1 // pred_check
      _
    $region27: #{tpu_custom_call.1} parent=1 // pred_check_branch
      %34 = sbr.rel (0) target = $region29
    $region28: #{tpu_custom_call.1} parent=1 // pred_region
      %36 = vsyncadd [#allocation3], 0
      %s38 = sshll.u32 %s6, 4
      %s39 = int_to_ptr.hbm [resolvable:$true] %s38
      %s40 = sshll.u32 [#allocation2], 4
      %s41 = int_to_ptr.vmem [resolvable:$true] %s40
      %43 = dma.hbm_to_vmem [thread:$0]  %s39, 64, %s41, [#allocation3]
    $region29: #{tpu_custom_call.1} parent=1 // pred_fallthru
      _
    // Predicated region
    $region30: #{tpu_custom_call.1} parent=1 // pred_check
      _
    $region31: #{tpu_custom_call.1} parent=1 // pred_check_branch
      %45 = sbr.rel (0) target = $region33
    $region32: #{tpu_custom_call.1} parent=1 // pred_region
      _
    $region33: #{tpu_custom_call.1} parent=1 // pred_fallthru
      _
    // Predicated region
    $region34: #{tpu_custom_call.1} parent=1 // pred_check
      _
    $region35: #{tpu_custom_call.1} parent=1 // pred_check_branch
      %47 = sbr.rel (0) target = $region37
    $region36: #{tpu_custom_call.1} parent=1 // pred_region
      %49 = vsyncadd [#allocation5], 0
      %s51 = sshll.u32 %s8, 4
      %s52 = int_to_ptr.hbm [resolvable:$true] %s51
      %s53 = sshll.u32 [#allocation4], 4
      %s54 = int_to_ptr.vmem [resolvable:$true] %s53
      %56 = dma.hbm_to_vmem [thread:$0]  %s52, 64, %s54, [#allocation5]
    $region37: #{tpu_custom_call.1} parent=1 // pred_fallthru
      _
    // Predicated region
    $region38: #{tpu_custom_call.1} parent=1 // pred_check
      _
    $region39: #{tpu_custom_call.1} parent=1 // pred_check_branch
      %58 = sbr.rel (0) target = $region41
    $region40: #{tpu_custom_call.1} parent=1 // pred_region
      %60 = vsyncadd [#allocation5], 0
      %s62 = sshll.u32 %s9, 4
      %s63 = int_to_ptr.hbm [resolvable:$true] %s62
      %s64 = sshll.u32 [#allocation6], 4
      %s65 = int_to_ptr.vmem [resolvable:$true] %s64
      %67 = dma.hbm_to_vmem [thread:$0]  %s63, 64, %s65, [#allocation5]
    $region41: #{tpu_custom_call.1} parent=1 // pred_fallthru
      _
    // Predicated region
    $region42: #{tpu_custom_call.1} parent=1 // pred_check
      _
    $region43: #{tpu_custom_call.1} parent=1 // pred_check_branch
      %69 = sbr.rel (0) target = $region45
    $region44: #{tpu_custom_call.1} parent=1 // pred_region
      _
    $region45: #{tpu_custom_call.1} parent=1 // pred_fallthru
      _
    // Predicated region
    $region46: #{tpu_custom_call.1} parent=1 // pred_check
      _
    $region47: #{tpu_custom_call.1} parent=1 // pred_check_branch
      %71 = sbr.rel (0) target = $region49
    $region48: #{tpu_custom_call.1} parent=1 // pred_region
      _
    $region49: #{tpu_custom_call.1} parent=1 // pred_fallthru
      _
    // Predicated region
    $region50: #{tpu_custom_call.1} parent=1 // pred_check
      _
    $region51: #{tpu_custom_call.1} parent=1 // pred_check_branch
      %73 = sbr.rel (0) target = $region53
    $region52: #{tpu_custom_call.1} parent=1 // pred_region
      _
    $region53: #{tpu_custom_call.1} parent=1 // pred_fallthru
      _
    // Predicated region
    $region54: #{tpu_custom_call.1} parent=1 // pred_check
      _
    $region55: #{tpu_custom_call.1} parent=1 // pred_check_branch
      %75 = sbr.rel (0) target = $region57
    $region56: #{tpu_custom_call.1} parent=1 // pred_region
      _
    $region57: #{tpu_custom_call.1} parent=1 // pred_fallthru
      _
    // Predicated region
    $region58: #{tpu_custom_call.1} parent=1 // pred_check
      _
    $region59: #{tpu_custom_call.1} parent=1 // pred_check_branch
      %77 = sbr.rel (0) target = $region61
    $region60: #{tpu_custom_call.1} parent=1 // pred_region
      %79 = dma.done [#allocation3], 64
    $region61: #{tpu_custom_call.1} parent=1 // pred_fallthru
      _
    // Predicated region
    $region62: #{tpu_custom_call.1} parent=1 // pred_check
      _
    $region63: #{tpu_custom_call.1} parent=1 // pred_check_branch
      %81 = sbr.rel (0) target = $region65
    $region64: #{tpu_custom_call.1} parent=1 // pred_region
      %83 = dma.done [#allocation5], 64
    $region65: #{tpu_custom_call.1} parent=1 // pred_fallthru
      _
    // Predicated region
    $region66: #{tpu_custom_call.1} parent=1 // pred_check
      _
    $region67: #{tpu_custom_call.1} parent=1 // pred_check_branch
      %85 = sbr.rel (0) target = $region69
    $region68: #{tpu_custom_call.1} parent=1 // pred_region
      %87 = dma.done [#allocation5], 64
    $region69: #{tpu_custom_call.1} parent=1 // pred_fallthru
      _
    %v89 = vld [vmem:[%s0] sm:$0xf]
    %v90 = vld [vmem:[%s5] sm:$0xf]
    %v91 = vld [vmem:[%s1] sm:$0xf]
    %v92 = vld [vmem:[#allocation2] sm:$0xf]
    %vm93 = vcmask 64512
    %v95 = vsel %vm93, %v91, 0
    %vm97 = vcmask 1043456
    %v99 = vsel %vm97, %v92, 0
    %101 = vmatpush.bf16.msra.mxu0 0
    %102 = vmatpush.bf16.msra.mxu0 0
    %103 = vmatpush.bf16.msra.mxu0 0
    %104 = vmatpush.bf16.msra.mxu0 0
    %105 = vmatpush.bf16.msra.mxu0 0
    %106 = vmatpush.bf16.msra.mxu0 0
    %107 = vmatpush.bf16.msra.mxu0 0
    %108 = vmatpush.bf16.msra.mxu0 %v99
    %109 = vmatmul.bf16.gmra.mxu0 %v95
    %v110 = vpop.f32.mrf.mxu0
    %v111 = vadd.f32 0.0, %v110
    %v112 = vpop.f32.mrf.mxu0
    %113 = vdwg.mxu0
    %v115 = vsel %vm93, %v89, 0
    %v118 = vsel %vm97, %v90, 0
    %120 = vmatpush.bf16.msra.mxu0 0
    %121 = vmatpush.bf16.msra.mxu0 0
    %122 = vmatpush.bf16.msra.mxu0 0
    %123 = vmatpush.bf16.msra.mxu0 0
    %124 = vmatpush.bf16.msra.mxu0 0
    %125 = vmatpush.bf16.msra.mxu0 0
    %126 = vmatpush.bf16.msra.mxu0 0
    %127 = vmatpush.bf16.msra.mxu0 %v118
    %128 = vmatmul.bf16.gmra.mxu0 %v115
    %v129 = vpop.f32.mrf.mxu0
    %v130 = vadd.f32 %v111, %v129
    %v131 = vpop.f32.mrf.mxu0
    %132 = vdwg.mxu0
    %v133 = vld [vmem:[%s2] sm:$0xf]
    %v134 = vld [vmem:[%s7] sm:$0xf]
    %v136 = vsel %vm93, %v133, 0
    %v139 = vsel %vm97, %v134, 0
    %141 = vmatpush.bf16.msra.mxu0 0
    %142 = vmatpush.bf16.msra.mxu0 0
    %143 = vmatpush.bf16.msra.mxu0 0
    %144 = vmatpush.bf16.msra.mxu0 0
    %145 = vmatpush.bf16.msra.mxu0 0
    %146 = vmatpush.bf16.msra.mxu0 0
    %147 = vmatpush.bf16.msra.mxu0 0
    %148 = vmatpush.bf16.msra.mxu0 %v139
    %149 = vmatmul.bf16.gmra.mxu0 %v136
    %v150 = vpop.f32.mrf.mxu0
    %v151 = vadd.f32 0.0, %v150
    %v152 = vpop.f32.mrf.mxu0
    %153 = vdwg.mxu0
    %v154 = vadd.f32 %v130, %v151
    %v155 = vld [vmem:[%s3] sm:$0xf]
    %v156 = vld [vmem:[#allocation4] sm:$0xf]
    %v158 = vsel %vm93, %v155, 0
    %v161 = vsel %vm97, %v156, 0
    %163 = vmatpush.bf16.msra.mxu0 0
    %164 = vmatpush.bf16.msra.mxu0 0
    %165 = vmatpush.bf16.msra.mxu0 0
    %166 = vmatpush.bf16.msra.mxu0 0
    %167 = vmatpush.bf16.msra.mxu0 0
    %168 = vmatpush.bf16.msra.mxu0 0
    %169 = vmatpush.bf16.msra.mxu0 0
    %170 = vmatpush.bf16.msra.mxu0 %v161
    %171 = vmatmul.bf16.gmra.mxu0 %v158
    %v172 = vpop.f32.mrf.mxu0
    %v173 = vadd.f32 0.0, %v172
    %v174 = vpop.f32.mrf.mxu0
    %175 = vdwg.mxu0
    %v176 = vadd.f32 %v154, %v173
    %v177 = vld [vmem:[%s4] sm:$0xf]
    %v178 = vld [vmem:[#allocation6] sm:$0xf]
    %v180 = vsel %vm93, %v177, 0
    %v183 = vsel %vm97, %v178, 0
    %185 = vmatpush.bf16.msra.mxu0 0
    %186 = vmatpush.bf16.msra.mxu0 0
    %187 = vmatpush.bf16.msra.mxu0 0
    %188 = vmatpush.bf16.msra.mxu0 0
    %189 = vmatpush.bf16.msra.mxu0 0
    %190 = vmatpush.bf16.msra.mxu0 0
    %191 = vmatpush.bf16.msra.mxu0 0
    %192 = vmatpush.bf16.msra.mxu0 %v183
    %193 = vmatmul.bf16.gmra.mxu0 %v180
    %v194 = vpop.f32.mrf.mxu0
    %v195 = vadd.f32 0.0, %v194
    %v196 = vpop.f32.mrf.mxu0
    %197 = vdwg.mxu0
    %v198 = vadd.f32 %v176, %v195
    %v199 = vld [vmem:[%s10] sm:$0x1]
    %v201 = vperm.slane %v199, 0
    %v203 = vadd.f32 %v198, %v201
    %v204 = vmax.f32 %v203, 0.0
    %v205 = vpack.c.bf16 %v204, %v204
    %v206 = vld [vmem:[%s11] sm:$0xf]
    %v207 = vld [vmem:[%s11 + $0x4] sm:$0xf]
    %v208 = vld [vmem:[%s11 + $0x8] sm:$0xf]
    %v209 = vld [vmem:[%s11 + $0xc] sm:$0xf]
    %v210 = vld [vmem:[%s12] sm:$0x1]
    %v212 = vperm.slane %v210, 0
    %v218 = vunpack.c.l.b16 %v206
    %v219 = vunpack.c.l.b16 %v207
    %v220 = vunpack.c.l.b16 %v208
    %v221 = vunpack.c.l.b16 %v209
    %v222 = vpack.c.b16 %v219, %v218
    %v223 = vpack.c.b16 %v221, %v220
    %vm226 = vcmask 261120
    %v228 = vsel %vm226, %v205, 0
    %230 = vmatpush.bf16.msra.mxu0 0
    %231 = vmatpush.bf16.msra.mxu0 0
    %232 = vmatpush.bf16.msra.mxu0 0
    %233 = vmatpush.bf16.msra.mxu0 0
    %234 = vmatpush.bf16.msra.mxu0 0
    %235 = vmatpush.bf16.msra.mxu0 0
    %236 = vmatpush.bf16.msra.mxu0 %v223
    %237 = vmatpush.bf16.msra.mxu0 %v222
    %238 = vmatmul.bf16.gmra.mxu0 %v228
    %v239 = vpop.f32.mrf.mxu0
    %v240 = vadd.f32 %v212, %v239
    %v241 = vpop.f32.mrf.mxu0
    %242 = vdwg.mxu0
    %v243 = vmax.f32 %v240, -20.0
    %v244 = vmin.f32 %v243, 2.0
    %v245 = vmul.f32 %v244, 1.442695
    %v246 = vpow.pop %v245
    %v247 = vld [vmem:[%s13] sm:$0xff]
    %249 = vrot.lane.b32.xlu0 %v247, 2
    %v250 = vpop.permute.xlu0 %249
    %v252 = vmul.f32 %v246, %v250
    %254 = vrot.lane.b32.xlu0 %v252, 126
    %v255 = vpop.permute.xlu0 %254
    %v257 = vadd.f32 %v240, %v255
    %v258 = vtanh.pop %v257
    %v259 = vtanh.pop %v240
    %261 = vrot.lane.b32.xlu0 %v259, 2
    %v262 = vpop.permute.xlu0 %261
    %vm264 = vcmask 15360
    %v265 = vsel %vm264, %v258, %v262
    %vm266 = vcmask 31744
    %267 = vst.msk [vmem:[%s14] sm:$0xff] %vm266, %v265
    // Predicated region
    $region70: #{tpu_custom_call.1} parent=1 // pred_check
      _
    $region71: #{tpu_custom_call.1} parent=1 // pred_check_branch
      %269 = sbr.rel (0) target = $region73
    $region72: #{tpu_custom_call.1} parent=1 // pred_region
      _
    $region73: #{tpu_custom_call.1} parent=1 // pred_fallthru
      _
    // Predicated region
    $region74: #{tpu_custom_call.1} parent=1 // pred_check
      _
    $region75: #{tpu_custom_call.1} parent=1 // pred_check_branch
      %271 = sbr.rel (0) target = $region77
    $region76: #{tpu_custom_call.1} parent=1 // pred_region
      _
    $region77: #{tpu_custom_call.1} parent=1 // pred_fallthru
      _
    %272 = vsyncpa [#allocation3], 1
    %273 = vsyncpa [#allocation5], 1

</llo_original>
